<compile_context>
chip_gen: v5e
topology: v5e:2x2
jax: 0.10.0
libtpu: 0.0.40
codegen_flags: <defaults>
</compile_context>

<pallas_src>
import functools
import math
from typing import NamedTuple, Tuple

import jax
import jax.numpy as jnp
from jax.experimental import pallas as pl
from jax.experimental.pallas import tpu as pltpu

_WHOLE_BYTES = 4 << 20          # arrays at or below this take the single-block path
_WHOLE_VMEM_BUDGET = 6 << 20    # per-array padded-VMEM cap for the single-block path
_SUBLANE_FOR_ITEMSIZE = {4: 8, 2: 16, 1: 32}


def _round_up(x: int, m: int) -> int:
    return ((x + m - 1) // m) * m


def _scale_kernel(sigma_ref, noise_ref, out_ref):
    # sigma lives in SMEM as float32; cast to the noise dtype in-kernel.
    # Memory-bound kernel -> the VPU mul/cast is free slack.
    out_ref[...] = noise_ref[...] * sigma_ref[0].astype(noise_ref.dtype)


class _Plan(NamedTuple):
    orig_shape: Tuple[int, ...]
    whole: bool      # single whole-array block, no grid
    total: int       # element count
    lanes: int       # last dim of the 2-D tiled view (0 on whole path)
    rows: int        # first dim of the 2-D tiled view (0 on whole path)
    padded: bool     # whether the tiled view carries tail padding


def _vmem_whole_bytes(shape, itemsize) -> int:
    """Padded VMEM footprint of a full-array block (last two dims tile to (sublane,128))."""
    if len(shape) == 0:
        return 8 * 128 * itemsize
    sub = _SUBLANE_FOR_ITEMSIZE.get(itemsize, 8)
    last = _round_up(shape[-1], 128)
    second = _round_up(shape[-2], sub) if len(shape) >= 2 else 1
    lead = math.prod(shape[:-2]) if len(shape) > 2 else 1
    return lead * second * last * itemsize


def _make_plan(shape, dtype) -> _Plan:
    shape = tuple(int(s) for s in shape)
    total = int(math.prod(shape)) if shape else 1
    itemsize = jnp.dtype(dtype).itemsize
    if (total * itemsize <= _WHOLE_BYTES
            and _vmem_whole_bytes(shape, itemsize) <= _WHOLE_VMEM_BUDGET):
        return _Plan(shape, True, total, 0, 0, False)
    # Largest lane width in {512,256,128} that divides the tensor -> no padding
    # for most real (N,C,D,H,W) products; otherwise pad once with 512 lanes.
    lanes = next((l for l in (512, 256, 128) if total % l == 0), 512)
    padded = (total % lanes) != 0
    rows = pl.cdiv(total, lanes)
    return _Plan(shape, False, total, lanes, rows, padded)


def _lay_out(x: jax.Array, plan: _Plan) -> jax.Array:
    """Layout pass: flatten (+pad only if needed) into (rows, lanes).  Identity on the whole path."""
    if plan.whole:
        return x
    flat = x.reshape(-1)
    pad = plan.rows * plan.lanes - plan.total
    if pad:
        flat = jnp.pad(flat, (0, pad))
    return flat.reshape(plan.rows, plan.lanes)


@functools.lru_cache(maxsize=None)
def _base_block_rows() -> int:
    # 2048x512 f32 = 4 MiB blocks on v5e/v6e (already ~roofline); 8 MiB on v7x
    # where 3.2 TB/s HBM makes the ~0.35 us per-grid-step overhead visible.
    try:
        kind = jax.devices()[0].device_kind.lower()
    except Exception:
        return 2048
    return 4096 if "v7" in kind else 2048


def _run_whole(x: jax.Array, sigma_arr: jax.Array) -> jax.Array:
    # Whole array as one VMEM block (block_shape == array dims is exempt from
    # the (8,128) divisibility rule).  No grid, no wrapper copies.
    return pl.pallas_call(
        _scale_kernel,
        out_shape=jax.ShapeDtypeStruct(x.shape, x.dtype),
        in_specs=[
            pl.BlockSpec(memory_space=pltpu.MemorySpace.SMEM),
            pl.BlockSpec(memory_space=pltpu.MemorySpace.VMEM),
        ],
        out_specs=pl.BlockSpec(memory_space=pltpu.MemorySpace.VMEM),
    )(sigma_arr, x)


def _run_tiled(x2d: jax.Array, sigma_arr: jax.Array) -> jax.Array:
    rows, lanes = x2d.shape
    itemsize = jnp.dtype(x2d.dtype).itemsize

    base = _base_block_rows()
    block_rows = base * (512 // lanes)          # keep ~constant bytes per block
    if base > 2048 and rows < 4 * block_rows:   # keep >=4 steps for the v7x 2-TC split
        block_rows //= 2

    grid = (pl.cdiv(rows, block_rows),)         # partial final block masked by Pallas
    block_bytes = block_rows * lanes * itemsize
    vmem_limit = max(32 << 20, 4 * block_bytes + (8 << 20))

    cost = pl.CostEstimate(
        flops=rows * lanes,
        transcendentals=0,
        bytes_accessed=2 * rows * lanes * itemsize,
    )

    return pl.pallas_call(
        _scale_kernel,
        out_shape=jax.ShapeDtypeStruct((rows, lanes), x2d.dtype),
        grid_spec=pltpu.PrefetchScalarGridSpec(
            num_scalar_prefetch=0,
            grid=grid,
            in_specs=[
                # sigma: tiny float32 scalar resident in SMEM, no blocking.
                pl.BlockSpec(memory_space=pltpu.MemorySpace.SMEM),
                # noise tile: multi-MiB lane-dense block.
                pl.BlockSpec((block_rows, lanes), lambda i: (i, 0)),
            ],
            out_specs=pl.BlockSpec((block_rows, lanes), lambda i: (i, 0)),
        ),
        compiler_params=pltpu.CompilerParams(
            dimension_semantics=("parallel",),   # megacore split on v7x
            vmem_limit_bytes=vmem_limit,
        ),
        cost_estimate=cost,
    )(sigma_arr, x2d)


def _run_plan(laid_out: jax.Array, sigma, plan: _Plan) -> jax.Array:
    sigma_arr = jnp.asarray([sigma], dtype=jnp.float32)
    if plan.whole:
        return _run_whole(laid_out, sigma_arr)
    out2d = _run_tiled(laid_out, sigma_arr)
    if plan.padded:
        # Fix-up slice only when padding actually occurred.
        return out2d.reshape(-1)[: plan.total].reshape(plan.orig_shape)
    return out2d.reshape(plan.orig_shape)


def image_generator_forward(noise_buf: jax.Array, sigma) -> jax.Array:
    """Pallas implementation of ImageGenerator.forward(): noise_buf * sigma."""
    plan = _make_plan(noise_buf.shape, noise_buf.dtype)
    return _run_plan(_lay_out(noise_buf, plan), sigma, plan)


class ImageGeneratorJax:
    """Mirror of the PyTorch ImageGenerator module (synthetic InputNoise params)."""

    def __init__(self, num_output_channels, output_spatial_size, key, sigma=0.1):
        self.num_output_channels = num_output_channels
        self.output_spatial_size = tuple(output_spatial_size)
        self.sigma = sigma
        # InputNoise buffer: deterministic uniform noise, shape [1, C, *spatial].
        self.noise = jax.random.uniform(
            key,
            (1, num_output_channels, *self.output_spatial_size),
            dtype=jnp.float32,
        )
        # Lay out the persistent buffer ONCE so forward() never pays a pad /
        # reshape HBM pass (identity for the small whole-array path).
        self._plan = _make_plan(self.noise.shape, self.noise.dtype)
        self._laid_out = _lay_out(self.noise, self._plan)

    def forward(self):
        return _run_plan(self._laid_out, self.sigma, self._plan)

    def test_forward_pass_dimensions(self):
        out = self.forward()
        assert out.shape[-3:] == self.output_spatial_size
        assert out.shape[-4] == self.num_output_channels


if __name__ == "__main__":
    key = jax.random.PRNGKey(0)

    num_output_channels = 4
    output_spatial_size = (8, 16, 16)   # (D, H, W)

    gen = ImageGeneratorJax(num_output_channels, output_spatial_size, key, sigma=0.1)
    out = jax.block_until_ready(gen.forward())

    # Same checks as the PyTorch module's test_forward_pass_dimensions().
    assert out.shape[-3:] == output_spatial_size
    assert out.shape[-4] == num_output_channels
    assert jnp.allclose(out, gen.noise * 0.1, atol=1e-6)

    # Ragged small shape -> whole-array single-block path (no pad/reshape at all).
    odd = jax.random.uniform(jax.random.PRNGKey(1), (1, 3, 5, 7, 11), jnp.float32)
    odd_out = jax.block_until_ready(image_generator_forward(odd, 0.25))
    assert odd_out.shape == odd.shape
    assert jnp.allclose(odd_out, odd * 0.25, atol=1e-6)

    # Lane-divisible large shape -> tiled path, no padding, no fix-up slice.
    big = jax.random.uniform(jax.random.PRNGKey(2), (2, 4, 16, 128, 128), jnp.float32)
    big_out = jax.block_until_ready(image_generator_forward(big, 0.5))
    assert big_out.shape == big.shape
    assert jnp.allclose(big_out, big * 0.5, atol=1e-6)

    # Ragged large shape -> tiled path with one-time pad and partial final block.
    rag = jax.random.uniform(jax.random.PRNGKey(3), (1, 3, 101, 59, 59), jnp.float32)
    rag_out = jax.block_until_ready(image_generator_forward(rag, 2.0))
    assert rag_out.shape == rag.shape
    assert jnp.allclose(rag_out, rag * 2.0, atol=1e-6)

    print("KERNEL_OK")
</pallas_src>

<mosaic_0001>
module attributes {stable_mosaic.version = 11 : i64} {
  func.func @_scale_kernel(%arg0: memref<1xf32, #tpu.memory_space<smem>>, %arg1: memref<1x4x8x16x16xf32, #tpu.memory_space<vmem>>, %arg2: memref<1x4x8x16x16xf32, #tpu.memory_space<vmem>>) attributes {dimension_semantics = [], scalar_prefetch = 0 : i64, scratch_operands = 0 : i64, tpu.core_type = #tpu.core_type<tc>} {
    %c0 = arith.constant 0 : index
    %c0_0 = arith.constant 0 : index
    %c0_1 = arith.constant 0 : index
    %c0_2 = arith.constant 0 : index
    %c0_3 = arith.constant 0 : index
    %0 = vector.load %arg1[%c0, %c0_0, %c0_1, %c0_2, %c0_3] : memref<1x4x8x16x16xf32, #tpu.memory_space<vmem>>, vector<1x4x8x16x16xf32>
    %c0_4 = arith.constant 0 : index
    %1 = memref.load %arg0[%c0_4] : memref<1xf32, #tpu.memory_space<smem>>
    %2 = vector.broadcast %1 : f32 to vector<1x4x8x16x16xf32>
    %3 = arith.mulf %0, %2 : vector<1x4x8x16x16xf32>
    %c0_5 = arith.constant 0 : index
    %c0_6 = arith.constant 0 : index
    %c0_7 = arith.constant 0 : index
    %c0_8 = arith.constant 0 : index
    %c0_9 = arith.constant 0 : index
    %4 = vector.load %arg2[%c0_5, %c0_6, %c0_7, %c0_8, %c0_9] : memref<1x4x8x16x16xf32, #tpu.memory_space<vmem>>, vector<1x4x8x16x16xf32>
    tpu.vector_store %arg2[%c0_5, %c0_6, %c0_7, %c0_8, %c0_9], %3 {strides = array<i32>} : memref<1x4x8x16x16xf32, #tpu.memory_space<vmem>>, vector<1x4x8x16x16xf32>,
    return
  }
}

</mosaic_0001>

<llo_original>
// kernel: tpu_custom_call.1
$region0: #{tpu_custom_call.1}
  #allocation0 [shape = 'u32[]', space=smem, size = 0x4, offset = 0x4, fixed_abs, tag = 'smem constant byte address 0x4 - core index']
  #allocation1 [shape = 'u32[72,128]{1,0:T(1,128)}', space=vmem, size = 0x9000, scoped, tag = 'internal scratch']
  #allocation2 [shape = 'f32[1]{0:T(128)S(6)}', space=smem, size = 0x200, scoped, tag = 'scoped memory for tpu_custom_call.1']
  %s0 = inlined_call_operand.<no memory space> [shape: f32[1], index: 0, kind: input, shape index: {}]
  %s1 = inlined_call_operand.hbm [shape: f32[1,4,8,16,16], index: 1, kind: input, shape index: {}]
  %s2 = inlined_call_operand.hbm [shape: f32[1,4,8,16,16], index: 2, kind: output, shape index: {}]
  %s3 = sld [smem:[#allocation0]]
  $region22: #{tpu_custom_call.1} parent=0
    _
  %s5 = ssub.s32 1, %s3
  %s6 = scalar_select 0, %s5, %s3
  %7 = sst [smem:[#allocation2]] %s0
  $region1: #{tpu_custom_call.1} parent=0
    #allocation3 [shape = 'u8[262144]{0}', space=vmem, size = 0x40000, scoped, tag = 'input window, operand 1, single buffered']
    #allocation4 [shape = 's32[1]{0}', space=sflag, size = 0x4, scoped, tag = 'scoped memory for tpu_custom_call.1']
    #allocation5 [shape = 's32[1]{0}', space=sflag, size = 0x4, scoped, tag = 'scoped memory for tpu_custom_call.1']
    #allocation6 [shape = 'u8[262144]{0}', space=vmem, size = 0x40000, scoped, tag = 'output window, operand 0, single buffered']
    %8 = vsyncpa [#allocation4], 0
    %9 = vsyncpa [#allocation5], 0
    // Predicated region
    $region2: #{tpu_custom_call.1} parent=1 // pred_check
      _
    $region3: #{tpu_custom_call.1} parent=1 // pred_check_branch
      %11 = sbr.rel (0) target = $region5
    $region4: #{tpu_custom_call.1} parent=1 // pred_region
      _
    $region5: #{tpu_custom_call.1} parent=1 // pred_fallthru
      _
    // Predicated region
    $region6: #{tpu_custom_call.1} parent=1 // pred_check
      _
    $region7: #{tpu_custom_call.1} parent=1 // pred_check_branch
      %13 = sbr.rel (0) target = $region9
    $region8: #{tpu_custom_call.1} parent=1 // pred_region
      %15 = vsyncadd [#allocation4], 0
      %s16 = sshll.u32 %s1, 4
      %s17 = int_to_ptr.hbm [resolvable:$true] %s16
      %s18 = sshll.u32 [#allocation3], 4
      %s19 = int_to_ptr.vmem [resolvable:$true] %s18
      %24 = dma.hbm_to_vmem [thread:$0]  %s17, 8192, %s19, [#allocation4], 128, 128, 8
    $region9: #{tpu_custom_call.1} parent=1 // pred_fallthru
      _
    // Predicated region
    $region10: #{tpu_custom_call.1} parent=1 // pred_check
      _
    $region11: #{tpu_custom_call.1} parent=1 // pred_check_branch
      %26 = sbr.rel (0) target = $region13
    $region12: #{tpu_custom_call.1} parent=1 // pred_region
      %28 = dma.done [#allocation4], 8192
    $region13: #{tpu_custom_call.1} parent=1 // pred_fallthru
      _
    %v29 = vld [vmem:[#allocation3] sm:$0xff]
    %v30 = vld [vmem:[#allocation3 + $0x8] sm:$0xff]
    %v31 = vld [vmem:[#allocation3 + $0x10] sm:$0xff]
    %v32 = vld [vmem:[#allocation3 + $0x18] sm:$0xff]
    %v33 = vld [vmem:[#allocation3 + $0x20] sm:$0xff]
    %v34 = vld [vmem:[#allocation3 + $0x28] sm:$0xff]
    %v35 = vld [vmem:[#allocation3 + $0x30] sm:$0xff]
    %v36 = vld [vmem:[#allocation3 + $0x38] sm:$0xff]
    %v37 = vld [vmem:[#allocation3 + $0x40] sm:$0xff]
    %v38 = vld [vmem:[#allocation3 + $0x48] sm:$0xff]
    %v39 = vld [vmem:[#allocation3 + $0x50] sm:$0xff]
    %v40 = vld [vmem:[#allocation3 + $0x58] sm:$0xff]
    %v41 = vld [vmem:[#allocation3 + $0x60] sm:$0xff]
    %v42 = vld [vmem:[#allocation3 + $0x68] sm:$0xff]
    %v43 = vld [vmem:[#allocation3 + $0x70] sm:$0xff]
    %v44 = vld [vmem:[#allocation3 + $0x78] sm:$0xff]
    %v45 = vld [vmem:[#allocation3 + $0x80] sm:$0xff]
    %v46 = vld [vmem:[#allocation3 + $0x88] sm:$0xff]
    %v47 = vld [vmem:[#allocation3 + $0x90] sm:$0xff]
    %v48 = vld [vmem:[#allocation3 + $0x98] sm:$0xff]
    %v49 = vld [vmem:[#allocation3 + $0xa0] sm:$0xff]
    %v50 = vld [vmem:[#allocation3 + $0xa8] sm:$0xff]
    %v51 = vld [vmem:[#allocation3 + $0xb0] sm:$0xff]
    %v52 = vld [vmem:[#allocation3 + $0xb8] sm:$0xff]
    %v53 = vld [vmem:[#allocation3 + $0xc0] sm:$0xff]
    %v54 = vld [vmem:[#allocation3 + $0xc8] sm:$0xff]
    %v55 = vld [vmem:[#allocation3 + $0xd0] sm:$0xff]
    %v56 = vld [vmem:[#allocation3 + $0xd8] sm:$0xff]
    %v57 = vld [vmem:[#allocation3 + $0xe0] sm:$0xff]
    %v58 = vld [vmem:[#allocation3 + $0xe8] sm:$0xff]
    %v59 = vld [vmem:[#allocation3 + $0xf0] sm:$0xff]
    %v60 = vld [vmem:[#allocation3 + $0xf8] sm:$0xff]
    %v61 = vld [vmem:[#allocation3 + $0x100] sm:$0xff]
    %v62 = vld [vmem:[#allocation3 + $0x108] sm:$0xff]
    %v63 = vld [vmem:[#allocation3 + $0x110] sm:$0xff]
    %v64 = vld [vmem:[#allocation3 + $0x118] sm:$0xff]
    %v65 = vld [vmem:[#allocation3 + $0x120] sm:$0xff]
    %v66 = vld [vmem:[#allocation3 + $0x128] sm:$0xff]
    %v67 = vld [vmem:[#allocation3 + $0x130] sm:$0xff]
    %v68 = vld [vmem:[#allocation3 + $0x138] sm:$0xff]
    %v69 = vld [vmem:[#allocation3 + $0x140] sm:$0xff]
    %v70 = vld [vmem:[#allocation3 + $0x148] sm:$0xff]
    %v71 = vld [vmem:[#allocation3 + $0x150] sm:$0xff]
    %v72 = vld [vmem:[#allocation3 + $0x158] sm:$0xff]
    %v73 = vld [vmem:[#allocation3 + $0x160] sm:$0xff]
    %v74 = vld [vmem:[#allocation3 + $0x168] sm:$0xff]
    %v75 = vld [vmem:[#allocation3 + $0x170] sm:$0xff]
    %v76 = vld [vmem:[#allocation3 + $0x178] sm:$0xff]
    %v77 = vld [vmem:[#allocation3 + $0x180] sm:$0xff]
    %v78 = vld [vmem:[#allocation3 + $0x188] sm:$0xff]
    %v79 = vld [vmem:[#allocation3 + $0x190] sm:$0xff]
    %v80 = vld [vmem:[#allocation3 + $0x198] sm:$0xff]
    %v81 = vld [vmem:[#allocation3 + $0x1a0] sm:$0xff]
    %v82 = vld [vmem:[#allocation3 + $0x1a8] sm:$0xff]
    %v83 = vld [vmem:[#allocation3 + $0x1b0] sm:$0xff]
    %v84 = vld [vmem:[#allocation3 + $0x1b8] sm:$0xff]
    %v85 = vld [vmem:[#allocation3 + $0x1c0] sm:$0xff]
    %v86 = vld [vmem:[#allocation3 + $0x1c8] sm:$0xff]
    %v87 = vld [vmem:[#allocation3 + $0x1d0] sm:$0xff]
    %v88 = vld [vmem:[#allocation3 + $0x1d8] sm:$0xff]
    %v89 = vld [vmem:[#allocation3 + $0x1e0] sm:$0xff]
    %v90 = vld [vmem:[#allocation3 + $0x1e8] sm:$0xff]
    %v91 = vld [vmem:[#allocation3 + $0x1f0] sm:$0xff]
    %v92 = vld [vmem:[#allocation3 + $0x1f8] sm:$0xff]
    %s93 = sld [smem:[#allocation2]]
    %v94 = vstv %s93
    %v95 = vmul.f32 %v29, %v94
    %v96 = vmul.f32 %v30, %v94
    %v97 = vmul.f32 %v31, %v94
    %v98 = vmul.f32 %v32, %v94
    %v99 = vmul.f32 %v33, %v94
    %v100 = vmul.f32 %v34, %v94
    %v101 = vmul.f32 %v35, %v94
    %v102 = vmul.f32 %v36, %v94
    %v103 = vmul.f32 %v37, %v94
    %v104 = vmul.f32 %v38, %v94
    %v105 = vmul.f32 %v39, %v94
    %v106 = vmul.f32 %v40, %v94
    %v107 = vmul.f32 %v41, %v94
    %v108 = vmul.f32 %v42, %v94
    %v109 = vmul.f32 %v43, %v94
    %v110 = vmul.f32 %v44, %v94
    %v111 = vmul.f32 %v45, %v94
    %v112 = vmul.f32 %v46, %v94
    %v113 = vmul.f32 %v47, %v94
    %v114 = vmul.f32 %v48, %v94
    %v115 = vmul.f32 %v49, %v94
    %v116 = vmul.f32 %v50, %v94
    %v117 = vmul.f32 %v51, %v94
    %v118 = vmul.f32 %v52, %v94
    %v119 = vmul.f32 %v53, %v94
    %v120 = vmul.f32 %v54, %v94
    %v121 = vmul.f32 %v55, %v94
    %v122 = vmul.f32 %v56, %v94
    %v123 = vmul.f32 %v57, %v94
    %v124 = vmul.f32 %v58, %v94
    %v125 = vmul.f32 %v59, %v94
    %v126 = vmul.f32 %v60, %v94
    %v127 = vmul.f32 %v61, %v94
    %v128 = vmul.f32 %v62, %v94
    %v129 = vmul.f32 %v63, %v94
    %v130 = vmul.f32 %v64, %v94
    %v131 = vmul.f32 %v65, %v94
    %v132 = vmul.f32 %v66, %v94
    %v133 = vmul.f32 %v67, %v94
    %v134 = vmul.f32 %v68, %v94
    %v135 = vmul.f32 %v69, %v94
    %v136 = vmul.f32 %v70, %v94
    %v137 = vmul.f32 %v71, %v94
    %v138 = vmul.f32 %v72, %v94
    %v139 = vmul.f32 %v73, %v94
    %v140 = vmul.f32 %v74, %v94
    %v141 = vmul.f32 %v75, %v94
    %v142 = vmul.f32 %v76, %v94
    %v143 = vmul.f32 %v77, %v94
    %v144 = vmul.f32 %v78, %v94
    %v145 = vmul.f32 %v79, %v94
    %v146 = vmul.f32 %v80, %v94
    %v147 = vmul.f32 %v81, %v94
    %v148 = vmul.f32 %v82, %v94
    %v149 = vmul.f32 %v83, %v94
    %v150 = vmul.f32 %v84, %v94
    %v151 = vmul.f32 %v85, %v94
    %v152 = vmul.f32 %v86, %v94
    %v153 = vmul.f32 %v87, %v94
    %v154 = vmul.f32 %v88, %v94
    %v155 = vmul.f32 %v89, %v94
    %v156 = vmul.f32 %v90, %v94
    %v157 = vmul.f32 %v91, %v94
    %v158 = vmul.f32 %v92, %v94
    %vm159 = vcmask 130048
    %160 = vst.msk [vmem:[#allocation6] sm:$0xff] %vm159, %v95
    %161 = vst.msk [vmem:[#allocation6 + $0x8] sm:$0xff] %vm159, %v96
    %162 = vst.msk [vmem:[#allocation6 + $0x10] sm:$0xff] %vm159, %v97
    %163 = vst.msk [vmem:[#allocation6 + $0x18] sm:$0xff] %vm159, %v98
    %164 = vst.msk [vmem:[#allocation6 + $0x20] sm:$0xff] %vm159, %v99
    %165 = vst.msk [vmem:[#allocation6 + $0x28] sm:$0xff] %vm159, %v100
    %166 = vst.msk [vmem:[#allocation6 + $0x30] sm:$0xff] %vm159, %v101
    %167 = vst.msk [vmem:[#allocation6 + $0x38] sm:$0xff] %vm159, %v102
    %168 = vst.msk [vmem:[#allocation6 + $0x40] sm:$0xff] %vm159, %v103
    %169 = vst.msk [vmem:[#allocation6 + $0x48] sm:$0xff] %vm159, %v104
    %170 = vst.msk [vmem:[#allocation6 + $0x50] sm:$0xff] %vm159, %v105
    %171 = vst.msk [vmem:[#allocation6 + $0x58] sm:$0xff] %vm159, %v106
    %172 = vst.msk [vmem:[#allocation6 + $0x60] sm:$0xff] %vm159, %v107
    %173 = vst.msk [vmem:[#allocation6 + $0x68] sm:$0xff] %vm159, %v108
    %174 = vst.msk [vmem:[#allocation6 + $0x70] sm:$0xff] %vm159, %v109
    %175 = vst.msk [vmem:[#allocation6 + $0x78] sm:$0xff] %vm159, %v110
    %176 = vst.msk [vmem:[#allocation6 + $0x80] sm:$0xff] %vm159, %v111
    %177 = vst.msk [vmem:[#allocation6 + $0x88] sm:$0xff] %vm159, %v112
    %178 = vst.msk [vmem:[#allocation6 + $0x90] sm:$0xff] %vm159, %v113
    %179 = vst.msk [vmem:[#allocation6 + $0x98] sm:$0xff] %vm159, %v114
    %180 = vst.msk [vmem:[#allocation6 + $0xa0] sm:$0xff] %vm159, %v115
    %181 = vst.msk [vmem:[#allocation6 + $0xa8] sm:$0xff] %vm159, %v116
    %182 = vst.msk [vmem:[#allocation6 + $0xb0] sm:$0xff] %vm159, %v117
    %183 = vst.msk [vmem:[#allocation6 + $0xb8] sm:$0xff] %vm159, %v118
    %184 = vst.msk [vmem:[#allocation6 + $0xc0] sm:$0xff] %vm159, %v119
    %185 = vst.msk [vmem:[#allocation6 + $0xc8] sm:$0xff] %vm159, %v120
    %186 = vst.msk [vmem:[#allocation6 + $0xd0] sm:$0xff] %vm159, %v121
    %187 = vst.msk [vmem:[#allocation6 + $0xd8] sm:$0xff] %vm159, %v122
    %188 = vst.msk [vmem:[#allocation6 + $0xe0] sm:$0xff] %vm159, %v123
    %189 = vst.msk [vmem:[#allocation6 + $0xe8] sm:$0xff] %vm159, %v124
    %190 = vst.msk [vmem:[#allocation6 + $0xf0] sm:$0xff] %vm159, %v125
    %191 = vst.msk [vmem:[#allocation6 + $0xf8] sm:$0xff] %vm159, %v126
    %192 = vst.msk [vmem:[#allocation6 + $0x100] sm:$0xff] %vm159, %v127
    %193 = vst.msk [vmem:[#allocation6 + $0x108] sm:$0xff] %vm159, %v128
    %194 = vst.msk [vmem:[#allocation6 + $0x110] sm:$0xff] %vm159, %v129
    %195 = vst.msk [vmem:[#allocation6 + $0x118] sm:$0xff] %vm159, %v130
    %196 = vst.msk [vmem:[#allocation6 + $0x120] sm:$0xff] %vm159, %v131
    %197 = vst.msk [vmem:[#allocation6 + $0x128] sm:$0xff] %vm159, %v132
    %198 = vst.msk [vmem:[#allocation6 + $0x130] sm:$0xff] %vm159, %v133
    %199 = vst.msk [vmem:[#allocation6 + $0x138] sm:$0xff] %vm159, %v134
    %200 = vst.msk [vmem:[#allocation6 + $0x140] sm:$0xff] %vm159, %v135
    %201 = vst.msk [vmem:[#allocation6 + $0x148] sm:$0xff] %vm159, %v136
    %202 = vst.msk [vmem:[#allocation6 + $0x150] sm:$0xff] %vm159, %v137
    %203 = vst.msk [vmem:[#allocation6 + $0x158] sm:$0xff] %vm159, %v138
    %204 = vst.msk [vmem:[#allocation6 + $0x160] sm:$0xff] %vm159, %v139
    %205 = vst.msk [vmem:[#allocation6 + $0x168] sm:$0xff] %vm159, %v140
    %206 = vst.msk [vmem:[#allocation6 + $0x170] sm:$0xff] %vm159, %v141
    %207 = vst.msk [vmem:[#allocation6 + $0x178] sm:$0xff] %vm159, %v142
    %208 = vst.msk [vmem:[#allocation6 + $0x180] sm:$0xff] %vm159, %v143
    %209 = vst.msk [vmem:[#allocation6 + $0x188] sm:$0xff] %vm159, %v144
    %210 = vst.msk [vmem:[#allocation6 + $0x190] sm:$0xff] %vm159, %v145
    %211 = vst.msk [vmem:[#allocation6 + $0x198] sm:$0xff] %vm159, %v146
    %212 = vst.msk [vmem:[#allocation6 + $0x1a0] sm:$0xff] %vm159, %v147
    %213 = vst.msk [vmem:[#allocation6 + $0x1a8] sm:$0xff] %vm159, %v148
    %214 = vst.msk [vmem:[#allocation6 + $0x1b0] sm:$0xff] %vm159, %v149
    %215 = vst.msk [vmem:[#allocation6 + $0x1b8] sm:$0xff] %vm159, %v150
    %216 = vst.msk [vmem:[#allocation6 + $0x1c0] sm:$0xff] %vm159, %v151
    %217 = vst.msk [vmem:[#allocation6 + $0x1c8] sm:$0xff] %vm159, %v152
    %218 = vst.msk [vmem:[#allocation6 + $0x1d0] sm:$0xff] %vm159, %v153
    %219 = vst.msk [vmem:[#allocation6 + $0x1d8] sm:$0xff] %vm159, %v154
    %220 = vst.msk [vmem:[#allocation6 + $0x1e0] sm:$0xff] %vm159, %v155
    %221 = vst.msk [vmem:[#allocation6 + $0x1e8] sm:$0xff] %vm159, %v156
    %222 = vst.msk [vmem:[#allocation6 + $0x1f0] sm:$0xff] %vm159, %v157
    %223 = vst.msk [vmem:[#allocation6 + $0x1f8] sm:$0xff] %vm159, %v158
    // Predicated region
    $region14: #{tpu_custom_call.1} parent=1 // pred_check
      _
    $region15: #{tpu_custom_call.1} parent=1 // pred_check_branch
      %225 = sbr.rel (0) target = $region17
    $region16: #{tpu_custom_call.1} parent=1 // pred_region
      %227 = vsyncadd [#allocation5], 0
      %s228 = sshll.u32 [#allocation6], 4
      %s229 = int_to_ptr.vmem [resolvable:$true] %s228
      %s230 = sshll.u32 %s2, 4
      %s231 = int_to_ptr.hbm [resolvable:$true] %s230
      %236 = dma.vmem_to_hbm [thread:$0]  %s229, 8192, %s231, [#allocation5], 128, 128, 8
    $region17: #{tpu_custom_call.1} parent=1 // pred_fallthru
      _
    // Predicated region
    $region18: #{tpu_custom_call.1} parent=1 // pred_check
      _
    $region19: #{tpu_custom_call.1} parent=1 // pred_check_branch
      %238 = sbr.rel (0) target = $region21
    $region20: #{tpu_custom_call.1} parent=1 // pred_region
      %240 = dma.done [#allocation5], 8192
    $region21: #{tpu_custom_call.1} parent=1 // pred_fallthru
      _
    %241 = vsyncpa [#allocation4], 1
    %242 = vsyncpa [#allocation5], 1

</llo_original>
